<compile_context>
chip_gen: v5e
topology: v5e:2x2
jax: 0.10.0
libtpu: 0.0.40
codegen_flags: <defaults>
</compile_context>

<pallas_src>
import functools

import jax
import jax.numpy as jnp
from jax import lax
from jax.experimental import pallas as pl
from jax.experimental.pallas import tpu as pltpu


_BN_EPS = 1e-5
_INV_SQRT_2PI = 0.3989422804014327   # 1/sqrt(2*pi)
_INV_SQRT_2 = 0.7071067811865476     # 1/sqrt(2)


# ----------------------- pass 1: linear mean path + BatchNorm batch stats -----------------------
def _bn_stats_kernel(u_ref, w_ref, b_ref, gamma_ref, beta_ref, u_bn_ref, scale_ref):
    u = u_ref[...].astype(jnp.float32)               # (B, N_in)
    W = w_ref[...].astype(jnp.float32)               # (N_out, N_in)
    # u' = u @ W^T + b   (tiny; keep f32)
    u_lin = lax.dot_general(u, W, (((1,), (1,)), ((), ())),
                            preferred_element_type=jnp.float32) + b_ref[...]
    # training-mode BatchNorm1d statistics over the FULL batch (biased var, as PyTorch)
    mu = jnp.mean(u_lin, axis=0, keepdims=True)
    var = jnp.mean((u_lin - mu) ** 2, axis=0, keepdims=True)
    bn_scale = gamma_ref[...] * lax.rsqrt(var + _BN_EPS)           # EUP rsqrt
    u_bn_ref[...] = ((u_lin - mu) * bn_scale + beta_ref[...]).astype(u_bn_ref.dtype)
    scale_ref[...] = bn_scale.astype(scale_ref.dtype)


# -------------------- pass 2: covariance, correlation and moment activation ---------------------
def _cov_act_kernel(s_ref, rho_ref, u_bn_ref, scale_ref, w_ref,
                    u_out_ref, s_out_ref, rho_out_ref, *, matmul_dtype):
    s = s_ref[...].astype(jnp.float32)               # (bb, N_in)
    rho = rho_ref[...].astype(jnp.float32)           # (bb, N_in, N_in)
    u_bn = u_bn_ref[...].astype(jnp.float32)         # (bb, N_out)
    bn_scale = scale_ref[...].astype(jnp.float32)    # (1, N_out)
    W = w_ref[...].astype(jnp.float32)               # (N_out, N_in)

    bb, n_in = s.shape
    n_out = W.shape[0]
    W_mm = W.astype(matmul_dtype)

    # ---------------- Mnn_Linear_Corr covariance: C = W diag(s) rho diag(s) W^T ----------------
    # First contraction flattened over batch -> one (bb*N_in, N_in) x (N_in, N_out) MXU matmul
    # (bf16 operands, f32 accumulation).  No (B, N_in, N_in) c_in temporary, no W broadcast.
    r = (rho * s[:, None, :]).astype(matmul_dtype)                    # rho diag(s)
    t = lax.dot_general(r.reshape(bb * n_in, n_in), W_mm,
                        (((1,), (1,)), ((), ())),
                        preferred_element_type=jnp.float32)           # (bb*N_in, N_out)
    t = t.reshape(bb, n_in, n_out) * s[:, :, None]                    # diag(s) rho diag(s) W^T

    # diag(C) taken directly from t (no eye mask over the full (N_out, N_out) product):
    #   var[b, n] = sum_i W[n, i] * t[b, i, n]
    var_lin = jnp.maximum(jnp.sum(t * W.T[None, :, :], axis=1), 0.0)  # (bb, N_out)
    inv_s_lin = jnp.where(var_lin > 0.0,
                          lax.rsqrt(jnp.maximum(var_lin, 1e-30)), 0.0)   # EUP rsqrt
    s_lin = var_lin * inv_s_lin                                       # sqrt(var) (0 where var==0)

    # ------------- BatchNorm effect on the std path (Mnn_Std_Bn1d, bias=False) -------------
    # correlation is invariant to the per-feature affine rescaling (gamma is fixed at +2.5 in
    # the reference module; a negative gamma would flip off-diagonal signs -- not modeled).
    s_bn = s_lin * jnp.abs(bn_scale)

    # ---------------- moment activation (Gaussian-ReLU surrogate) ----------------
    # TODO(synk): original Mnn_Activate_* evaluate LIF Dawson integrals via a C++ extension.
    safe_s = jnp.maximum(s_bn, 1e-6)
    z = u_bn * pl.reciprocal(safe_s, approx=True)                     # EUP reciprocal
    pdf = jnp.exp(-0.5 * z * z) * _INV_SQRT_2PI
    cdf = 0.5 * (1.0 + lax.erf(z * _INV_SQRT_2))
    u_act = u_bn * cdf + safe_s * pdf                                 # E[relu(X)]
    raw_var = (u_bn * u_bn + safe_s * safe_s) * cdf + u_bn * safe_s * pdf - u_act * u_act
    raw_var = jnp.maximum(raw_var, 1e-12)
    inv_s_act = lax.rsqrt(raw_var)                                    # EUP rsqrt
    s_act = raw_var * inv_s_act                                       # sqrt(raw_var)
    chi = cdf * safe_s * inv_s_act                                    # linear-response coeff

    # combined per-feature scale for the correlation output:
    #   corr[b,m,n] = C[b,m,n] * g[b,m] * g[b,n] off-diagonal, 1 on the diagonal,
    # with g = chi / s_lin  (BN scale cancels in the correlation).
    g = inv_s_lin * chi
    gg = g[:, :, None] * g[:, None, :]                                # (bb, N_out, N_out)

    row = lax.broadcasted_iota(jnp.int32, (n_out, n_out), 0)
    col = lax.broadcasted_iota(jnp.int32, (n_out, n_out), 1)
    eye = (row == col).astype(jnp.float32)
    one_minus_eye = 1.0 - eye

    u_out_ref[...] = u_act.astype(u_out_ref.dtype)
    s_out_ref[...] = s_act.astype(s_out_ref.dtype)

    # Second contraction: one plain 2-D MXU matmul per sample against the *shared* 2-D W
    # (no broadcast_to of W across the batch); W stays resident across the unrolled loop and
    # each result tile is scaled + diagonal-reset and stored directly.
    t_mm = t.astype(matmul_dtype)
    for bi in range(bb):
        c_b = jnp.dot(W_mm, t_mm[bi], preferred_element_type=jnp.float32)   # (N_out, N_out)
        corr_b = c_b * gg[bi] * one_minus_eye + eye                         # unit diagonal
        rho_out_ref[bi] = corr_b.astype(rho_out_ref.dtype)


# ----------------------------------- wrapper / tiling logic ------------------------------------
def _vmem_budget_bytes():
    # Per-TensorCore VMEM capacity; fall back to the smallest current generation (v7x: 64 MiB).
    try:
        return int(pltpu.get_tpu_info().vmem_capacity_bytes)
    except Exception:
        return 64 * 1024 * 1024


def _tile_footprint_bytes(bb, n_in, n_out):
    """Rough per-grid-step VMEM footprint: double-buffered pipeline blocks + in-kernel temps."""
    io_block = bb * (n_in * n_in + n_out * n_out + n_in + 3 * n_out) + (n_out * n_in + n_out)
    temps = bb * (2 * n_in * n_out + n_out * n_out) + 2 * n_out * n_out
    return 4 * (2 * io_block + temps)


def _pick_block_b(B, n_in, n_out, vmem_budget):
    """Largest batch tile that keeps the sublane dim a multiple of 8 (or the full batch) and
    fits comfortably in the per-generation VMEM budget (v7x: 64 MiB, v5e/v6e: 128 MiB)."""
    cands = sorted({bb for bb in range(1, B + 1)
                    if B % bb == 0 and (bb % 8 == 0 or bb == B)}, reverse=True)
    for bb in cands:
        if _tile_footprint_bytes(bb, n_in, n_out) <= vmem_budget // 3:
            return bb
    return cands[-1]


def moment_layer_forward(u, s, rho, W, b, gamma, beta, *,
                         block_b=None, matmul_dtype=jnp.bfloat16):
    """Fused MomentLayer forward (two Pallas passes).

    Pass 1 computes the linear mean path and the training-mode BatchNorm statistics over the
    FULL batch (tiny, so it stays a single un-gridded call -- this keeps BN semantics exact
    under batch tiling).  Pass 2 tiles the heavy (B, N, N) covariance / correlation /
    activation work over batch with a "parallel" grid axis (2-TC megacore on v7x) and a
    VMEM-budget-aware tile size.
    """
    B, n_in = u.shape
    n_out = W.shape[0]
    f32 = jnp.float32

    b2 = b.reshape(1, n_out).astype(f32)
    gamma2 = gamma.reshape(1, n_out).astype(f32)
    beta2 = beta.reshape(1, n_out).astype(f32)

    vmem = lambda: pl.BlockSpec(memory_space=pltpu.MemorySpace.VMEM)

    # ---- pass 1: full-batch BN statistics ----
    u_bn, bn_scale = pl.pallas_call(
        _bn_stats_kernel,
        out_shape=(jax.ShapeDtypeStruct((B, n_out), f32),
                   jax.ShapeDtypeStruct((1, n_out), f32)),
        in_specs=[vmem() for _ in range(5)],
        out_specs=(vmem(), vmem()),
    )(u.astype(f32), W.astype(f32), b2, gamma2, beta2)

    # ---- pass 2: batch-tiled covariance + moment activation ----
    if block_b is None:
        block_b = _pick_block_b(B, n_in, n_out, _vmem_budget_bytes())
    if B % block_b != 0:
        raise ValueError(f"block_b={block_b} must divide batch size {B}")
    grid = (B // block_b,)
    vmem_limit = int(min(max(4 * _tile_footprint_bytes(block_b, n_in, n_out), 16 << 20),
                         48 << 20))   # stays below v7x's 64 MiB physical VMEM

    kernel = functools.partial(_cov_act_kernel, matmul_dtype=matmul_dtype)
    # TODO(synk): for v5e store-bound cases the rho output could be emitted in bfloat16; kept f32.
    u_act, s_act, corr_act = pl.pallas_call(
        kernel,
        out_shape=(jax.ShapeDtypeStruct((B, n_out), f32),
                   jax.ShapeDtypeStruct((B, n_out), f32),
                   jax.ShapeDtypeStruct((B, n_out, n_out), f32)),
        grid=grid,
        in_specs=[
            pl.BlockSpec((block_b, n_in), lambda i: (i, 0)),          # s
            pl.BlockSpec((block_b, n_in, n_in), lambda i: (i, 0, 0)),  # rho
            pl.BlockSpec((block_b, n_out), lambda i: (i, 0)),          # u_bn
            pl.BlockSpec((1, n_out), lambda i: (0, 0)),                # bn_scale
            pl.BlockSpec((n_out, n_in), lambda i: (0, 0)),             # W
        ],
        out_specs=(
            pl.BlockSpec((block_b, n_out), lambda i: (i, 0)),
            pl.BlockSpec((block_b, n_out), lambda i: (i, 0)),
            pl.BlockSpec((block_b, n_out, n_out), lambda i: (i, 0, 0)),
        ),
        compiler_params=pltpu.CompilerParams(
            # batch tiles are fully independent (BN stats were precomputed over the full batch)
            dimension_semantics=("parallel",),
            vmem_limit_bytes=vmem_limit,
        ),
    )(s.astype(f32), rho.astype(f32), u_bn, bn_scale, W.astype(f32))
    return u_act, s_act, corr_act


if __name__ == "__main__":
    key = jax.random.PRNGKey(0)
    B, N_IN, N_OUT = 16, 32, 32
    k1, k2, k3, k4, k5 = jax.random.split(key, 5)

    # inputs: mean, std (>0), valid correlation matrices
    u = jax.random.normal(k1, (B, N_IN), jnp.float32)
    s = jnp.abs(jax.random.normal(k2, (B, N_IN), jnp.float32)) + 0.5
    A = jax.random.normal(k3, (B, N_IN, N_IN), jnp.float32)
    C = jnp.einsum('bik,bjk->bij', A, A) + 1e-3 * jnp.eye(N_IN)[None]
    d = jnp.sqrt(jnp.diagonal(C, axis1=1, axis2=2))
    rho = C / (d[:, :, None] * d[:, None, :])

    # deterministic parameters (synthetic, no checkpoint)
    W = jax.random.normal(k4, (N_OUT, N_IN), jnp.float32) / jnp.sqrt(N_IN)
    b = 0.1 * jax.random.normal(k5, (N_OUT,), jnp.float32)
    gamma = jnp.full((N_OUT,), 2.5, jnp.float32)   # bn_mean.weight.data.fill_(2.5)
    beta = jnp.full((N_OUT,), 2.5, jnp.float32)    # bn_mean.bias.data.fill_(2.5)

    # block_b=8 -> grid of 2 batch tiles (exercises the "parallel" batch grid).
    u_act, s_act, corr_act = moment_layer_forward(u, s, rho, W, b, gamma, beta, block_b=8)
    jax.block_until_ready((u_act, s_act, corr_act))

    assert u_act.shape == (B, N_OUT) and s_act.shape == (B, N_OUT)
    assert corr_act.shape == (B, N_OUT, N_OUT)
    assert bool(jnp.all(jnp.isfinite(u_act)) & jnp.all(jnp.isfinite(s_act))
                & jnp.all(jnp.isfinite(corr_act)))
    assert bool(jnp.all(jnp.abs(jnp.diagonal(corr_act, axis1=1, axis2=2) - 1.0) < 1e-6))
    print("KERNEL_OK")
</pallas_src>

<mosaic_0001>
module attributes {stable_mosaic.version = 11 : i64} {
  func.func @_bn_stats_kernel(%arg0: memref<16x32xf32, #tpu.memory_space<vmem>>, %arg1: memref<32x32xf32, #tpu.memory_space<vmem>>, %arg2: memref<1x32xf32, #tpu.memory_space<vmem>>, %arg3: memref<1x32xf32, #tpu.memory_space<vmem>>, %arg4: memref<1x32xf32, #tpu.memory_space<vmem>>, %arg5: memref<16x32xf32, #tpu.memory_space<vmem>>, %arg6: memref<1x32xf32, #tpu.memory_space<vmem>>) attributes {dimension_semantics = [], scalar_prefetch = 0 : i64, scratch_operands = 0 : i64, tpu.core_type = #tpu.core_type<tc>} {
    %c0 = arith.constant 0 : index
    %c0_0 = arith.constant 0 : index
    %0 = vector.load %arg0[%c0, %c0_0] : memref<16x32xf32, #tpu.memory_space<vmem>>, vector<16x32xf32>
    %c0_1 = arith.constant 0 : index
    %c0_2 = arith.constant 0 : index
    %1 = vector.load %arg1[%c0_1, %c0_2] : memref<32x32xf32, #tpu.memory_space<vmem>>, vector<32x32xf32>
    %cst = arith.constant dense<0.000000e+00> : vector<16x32xf32>
    %2 = tpu.matmul %0, %1, %cst {dimension_numbers = #tpu.dot_dimension_numbers<[1], [1], [0], [0], [0, 0, 1, 0], [], []>} : vector<16x32xf32>, vector<32x32xf32>, vector<16x32xf32> -> vector<16x32xf32>
    %c0_3 = arith.constant 0 : index
    %c0_4 = arith.constant 0 : index
    %3 = vector.load %arg2[%c0_3, %c0_4] : memref<1x32xf32, #tpu.memory_space<vmem>>, vector<1x32xf32>
    %4 = vector.broadcast %3 : vector<1x32xf32> to vector<16x32xf32>
    %5 = arith.addf %2, %4 : vector<16x32xf32>
    %cst_5 = arith.constant dense<0.000000e+00> : vector<32xf32>
    %6 = vector.multi_reduction <add>, %5, %cst_5 [0] : vector<16x32xf32> to vector<32xf32>
    %7 = vector.shape_cast %6 : vector<32xf32> to vector<1x32xf32>
    %cst_6 = arith.constant 1.600000e+01 : f32
    %8 = vector.broadcast %cst_6 : f32 to vector<1x32xf32>
    %9 = arith.divf %7, %8 : vector<1x32xf32>
    %10 = vector.broadcast %9 : vector<1x32xf32> to vector<16x32xf32>
    %11 = arith.subf %5, %10 : vector<16x32xf32>
    %12 = arith.mulf %11, %11 : vector<16x32xf32>
    %cst_7 = arith.constant dense<0.000000e+00> : vector<32xf32>
    %13 = vector.multi_reduction <add>, %12, %cst_7 [0] : vector<16x32xf32> to vector<32xf32>
    %14 = vector.shape_cast %13 : vector<32xf32> to vector<1x32xf32>
    %cst_8 = arith.constant 1.600000e+01 : f32
    %15 = vector.broadcast %cst_8 : f32 to vector<1x32xf32>
    %16 = arith.divf %14, %15 : vector<1x32xf32>
    %c0_9 = arith.constant 0 : index
    %c0_10 = arith.constant 0 : index
    %17 = vector.load %arg3[%c0_9, %c0_10] : memref<1x32xf32, #tpu.memory_space<vmem>>, vector<1x32xf32>
    %cst_11 = arith.constant 9.99999974E-6 : f32
    %18 = vector.broadcast %cst_11 : f32 to vector<1x32xf32>
    %19 = arith.addf %16, %18 : vector<1x32xf32>
    %20 = math.rsqrt %19 : vector<1x32xf32>
    %21 = arith.mulf %17, %20 : vector<1x32xf32>
    %22 = vector.broadcast %9 : vector<1x32xf32> to vector<16x32xf32>
    %23 = arith.subf %5, %22 : vector<16x32xf32>
    %24 = vector.broadcast %21 : vector<1x32xf32> to vector<16x32xf32>
    %25 = arith.mulf %23, %24 : vector<16x32xf32>
    %c0_12 = arith.constant 0 : index
    %c0_13 = arith.constant 0 : index
    %26 = vector.load %arg4[%c0_12, %c0_13] : memref<1x32xf32, #tpu.memory_space<vmem>>, vector<1x32xf32>
    %27 = vector.broadcast %26 : vector<1x32xf32> to vector<16x32xf32>
    %28 = arith.addf %25, %27 : vector<16x32xf32>
    %c0_14 = arith.constant 0 : index
    %c0_15 = arith.constant 0 : index
    %29 = vector.load %arg5[%c0_14, %c0_15] : memref<16x32xf32, #tpu.memory_space<vmem>>, vector<16x32xf32>
    tpu.vector_store %arg5[%c0_14, %c0_15], %28 {strides = array<i32>} : memref<16x32xf32, #tpu.memory_space<vmem>>, vector<16x32xf32>,
    %c0_16 = arith.constant 0 : index
    %c0_17 = arith.constant 0 : index
    %30 = vector.load %arg6[%c0_16, %c0_17] : memref<1x32xf32, #tpu.memory_space<vmem>>, vector<1x32xf32>
    tpu.vector_store %arg6[%c0_16, %c0_17], %21 {strides = array<i32>} : memref<1x32xf32, #tpu.memory_space<vmem>>, vector<1x32xf32>,
    return
  }
}

</mosaic_0001>

<llo_original>
// kernel: tpu_custom_call.1
$region0: #{tpu_custom_call.1}
  #allocation0 [shape = 'u32[]', space=smem, size = 0x4, offset = 0x4, fixed_abs, tag = 'smem constant byte address 0x4 - core index']
  #allocation1 [shape = 'u32[72,128]{1,0:T(1,128)}', space=vmem, size = 0x9000, scoped, tag = 'internal scratch']
  %s0 = inlined_call_operand.hbm [shape: f32[16,32], index: 0, kind: input, shape index: {}]
  %s1 = inlined_call_operand.hbm [shape: f32[32,32], index: 1, kind: input, shape index: {}]
  %s2 = inlined_call_operand.vmem [shape: f32[1,32], index: 2, kind: input, shape index: {}]
  %s3 = inlined_call_operand.vmem [shape: f32[1,32], index: 3, kind: input, shape index: {}]
  %s4 = inlined_call_operand.vmem [shape: f32[1,32], index: 4, kind: input, shape index: {}]
  %s5 = inlined_call_operand.hbm [shape: f32[16,32], index: 5, kind: output, shape index: {0}]
  %s6 = inlined_call_operand.hbm [shape: f32[1,32], index: 6, kind: output, shape index: {1}]
  %7 = xla_tuple %s5, %s6
  %s8 = sld [smem:[#allocation0]]
  $region46: #{tpu_custom_call.1} parent=0
    _
  %s10 = ssub.s32 1, %s8
  %s11 = scalar_select 0, %s10, %s8
  $region1: #{tpu_custom_call.1} parent=0
    #allocation2 [shape = 'u8[8192]{0}', space=vmem, size = 0x2000, scoped, tag = 'input window, operand 0, single buffered']
    #allocation3 [shape = 's32[1]{0}', space=sflag, size = 0x4, scoped, tag = 'scoped memory for tpu_custom_call.1']
    #allocation4 [shape = 's32[1]{0}', space=sflag, size = 0x4, scoped, tag = 'scoped memory for tpu_custom_call.1']
    #allocation5 [shape = 'u8[16384]{0}', space=vmem, size = 0x4000, scoped, tag = 'input window, operand 1, single buffered']
    #allocation6 [shape = 's32[1]{0}', space=sflag, size = 0x4, scoped, tag = 'scoped memory for tpu_custom_call.1']
    #allocation7 [shape = 'u8[8192]{0}', space=vmem, size = 0x2000, scoped, tag = 'output window, operand 0, single buffered']
    #allocation8 [shape = 'u8[512]{0}', space=vmem, size = 0x400, scoped, tag = 'output window, operand 1, single buffered']
    #allocation9 [shape = 's32[1]{0}', space=sflag, size = 0x4, scoped, tag = 'scoped memory for tpu_custom_call.1']
    %12 = vsyncpa [#allocation3], 0
    %13 = vsyncpa [#allocation6], 0
    %14 = vsyncpa [#allocation4], 0
    %15 = vsyncpa [#allocation9], 0
    // Predicated region
    $region2: #{tpu_custom_call.1} parent=1 // pred_check
      _
    $region3: #{tpu_custom_call.1} parent=1 // pred_check_branch
      %17 = sbr.rel (0) target = $region5
    $region4: #{tpu_custom_call.1} parent=1 // pred_region
      %19 = vsyncadd [#allocation3], 0
      %s20 = sshll.u32 %s0, 4
      %s21 = int_to_ptr.hbm [resolvable:$true] %s20
      %s22 = sshll.u32 [#allocation2], 4
      %s23 = int_to_ptr.vmem [resolvable:$true] %s22
      %28 = dma.hbm_to_vmem [thread:$0]  %s21, 256, %s23, [#allocation3], 128, 128, 8
    $region5: #{tpu_custom_call.1} parent=1 // pred_fallthru
      _
    // Predicated region
    $region6: #{tpu_custom_call.1} parent=1 // pred_check
      _
    $region7: #{tpu_custom_call.1} parent=1 // pred_check_branch
      %30 = sbr.rel (0) target = $region9
    $region8: #{tpu_custom_call.1} parent=1 // pred_region
      %32 = vsyncadd [#allocation6], 0
      %s33 = sshll.u32 %s1, 4
      %s34 = int_to_ptr.hbm [resolvable:$true] %s33
      %s35 = sshll.u32 [#allocation5], 4
      %s36 = int_to_ptr.vmem [resolvable:$true] %s35
      %41 = dma.hbm_to_vmem [thread:$0]  %s34, 512, %s36, [#allocation6], 128, 128, 8
    $region9: #{tpu_custom_call.1} parent=1 // pred_fallthru
      _
    // Predicated region
    $region10: #{tpu_custom_call.1} parent=1 // pred_check
      _
    $region11: #{tpu_custom_call.1} parent=1 // pred_check_branch
      %43 = sbr.rel (0) target = $region13
    $region12: #{tpu_custom_call.1} parent=1 // pred_region
      _
    $region13: #{tpu_custom_call.1} parent=1 // pred_fallthru
      _
    // Predicated region
    $region14: #{tpu_custom_call.1} parent=1 // pred_check
      _
    $region15: #{tpu_custom_call.1} parent=1 // pred_check_branch
      %45 = sbr.rel (0) target = $region17
    $region16: #{tpu_custom_call.1} parent=1 // pred_region
      _
    $region17: #{tpu_custom_call.1} parent=1 // pred_fallthru
      _
    // Predicated region
    $region18: #{tpu_custom_call.1} parent=1 // pred_check
      _
    $region19: #{tpu_custom_call.1} parent=1 // pred_check_branch
      %47 = sbr.rel (0) target = $region21
    $region20: #{tpu_custom_call.1} parent=1 // pred_region
      _
    $region21: #{tpu_custom_call.1} parent=1 // pred_fallthru
      _
    // Predicated region
    $region22: #{tpu_custom_call.1} parent=1 // pred_check
      _
    $region23: #{tpu_custom_call.1} parent=1 // pred_check_branch
      %49 = sbr.rel (0) target = $region25
    $region24: #{tpu_custom_call.1} parent=1 // pred_region
      %51 = dma.done [#allocation3], 256
    $region25: #{tpu_custom_call.1} parent=1 // pred_fallthru
      _
    // Predicated region
    $region26: #{tpu_custom_call.1} parent=1 // pred_check
      _
    $region27: #{tpu_custom_call.1} parent=1 // pred_check_branch
      %53 = sbr.rel (0) target = $region29
    $region28: #{tpu_custom_call.1} parent=1 // pred_region
      %55 = dma.done [#allocation6], 512
    $region29: #{tpu_custom_call.1} parent=1 // pred_fallthru
      _
    %v56 = vld [vmem:[#allocation2] sm:$0xff]
    %v57 = vld [vmem:[#allocation2 + $0x8] sm:$0xff]
    %v58 = vld [vmem:[#allocation5] sm:$0xff]
    %v59 = vld [vmem:[#allocation5 + $0x8] sm:$0xff]
    %v60 = vld [vmem:[#allocation5 + $0x10] sm:$0xff]
    %v61 = vld [vmem:[#allocation5 + $0x18] sm:$0xff]
    %v62 = vld [vmem:[%s2] sm:$0x1]
    %v64 = vperm.slane %v62, 0
    %vm66 = vcmask 261120
    %v68 = vsel %vm66, %v56, 0
    %v71 = vsel %vm66, %v57, 0
    %v74 = vsel %vm66, %v58, 0
    %v77 = vsel %vm66, %v59, 0
    %v80 = vsel %vm66, %v60, 0
    %v83 = vsel %vm66, %v61, 0
    %85 = vmatpush.xpose.msra.mxu0 0.0
    %86 = vmatpush.xpose.msra.mxu0 0.0
    %87 = vmatpush.xpose.msra.mxu0 0.0
    %88 = vmatpush.xpose.msra.mxu0 0.0
    %89 = vmatpush.xpose.msra.mxu0 0.0
    %90 = vmatpush.xpose.msra.mxu0 0.0
    %91 = vmatpush.xpose.msra.mxu0 0.0
    %92 = vmatpush.xpose.msra.mxu0 0.0
    %93 = vmatpush.xpose.msra.mxu0 0.0
    %94 = vmatpush.xpose.msra.mxu0 0.0
    %95 = vmatpush.xpose.msra.mxu0 0.0
    %96 = vmatpush.xpose.msra.mxu0 0.0
    %97 = vmatpush.xpose.msra.mxu0 %v83
    %98 = vmatpush.xpose.msra.mxu0 %v80
    %99 = vmatpush.xpose.msra.mxu0 %v77
    %100 = vmatpush.xpose.msra.mxu0 %v74
    %101 = vmatmul.f32.gmra.mxu0 %v68
    %v102 = vpop.f32.mrf.mxu0
    %v103 = vadd.f32 %v64, %v102
    %104 = vmatmul.f32.gmra.mxu0 %v71
    %v105 = vpop.f32.mrf.mxu0
    %v106 = vadd.f32 %v64, %v105
    %107 = vdwg.mxu0
    %v108 = vsel %vm66, %v103, 0.0
    %v109 = vsel %vm66, %v106, 0.0
    %v110 = vadd.f32 %v108, %v109
    %v111 = vrot.slane %v110, 4
    %v112 = vadd.f32 %v110, %v111
    %v113 = vrot.slane %v112, 2
    %v114 = vadd.f32 %v112, %v113
    %v115 = vrot.slane %v114, 1
    %v116 = vadd.f32 %v114, %v115
    %v117 = vrcp.pop 16.0
    %v118 = vmul.f32 16.0, %v117
    %v119 = vsub.f32 1.0, %v118
    %v120 = vmul.f32 %v117, %v119
    %v121 = vadd.f32 %v117, %v120
    %vm122 = vweird.f32 %v117
    %v123 = vsel %vm122, %v117, %v121
    %v124 = vmul.f32 %v116, %v123
    %v125 = vsub.f32 %v103, %v124
    %v126 = vsub.f32 %v106, %v124
    %v127 = vmul.f32 %v125, %v125
    %v128 = vmul.f32 %v126, %v126
    %v129 = vsel %vm66, %v127, 0.0
    %v130 = vsel %vm66, %v128, 0.0
    %v131 = vadd.f32 %v129, %v130
    %v132 = vrot.slane %v131, 4
    %v133 = vadd.f32 %v131, %v132
    %v134 = vrot.slane %v133, 2
    %v135 = vadd.f32 %v133, %v134
    %v136 = vrot.slane %v135, 1
    %v137 = vadd.f32 %v135, %v136
    %v138 = vmul.f32 %v137, %v123
    %v139 = vld [vmem:[%s3] sm:$0x1]
    %v140 = vadd.f32 %v138, 1e-05
    %v141 = vrsqrt.pop %v140
    %v142 = vmul.f32 %v141, %v140
    %v143 = vmul.f32 %v142, %v141
    %v144 = vmul.f32 0.5, %v143
    %v145 = vsub.f32 1.5, %v144
    %v146 = vmul.f32 %v141, %v145
    %vm147 = vweird.f32 %v140
    %vm148 = vweird.f32 %v141
    %vm149 = vmor %vm147, %vm148
    %v150 = vsel %vm149, %v141, %v146
    %v151 = vmul.f32 %v139, %v150
    %v153 = vperm.slane %v151, 0
    %v155 = vmul.f32 %v125, %v153
    %v156 = vmul.f32 %v126, %v153
    %v157 = vld [vmem:[%s4] sm:$0x1]
    %v159 = vperm.slane %v157, 0
    %v161 = vadd.f32 %v155, %v159
    %v162 = vadd.f32 %v156, %v159
    %163 = vst.msk [vmem:[#allocation7] sm:$0xff] %vm66, %v161
    %164 = vst.msk [vmem:[#allocation7 + $0x8] sm:$0xff] %vm66, %v162
    %vm165 = vcmask 253952
    %166 = vst.msk [vmem:[#allocation8] sm:$0x1] %vm165, %v151
    // Predicated region
    $region30: #{tpu_custom_call.1} parent=1 // pred_check
      _
    $region31: #{tpu_custom_call.1} parent=1 // pred_check_branch
      %168 = sbr.rel (0) target = $region33
    $region32: #{tpu_custom_call.1} parent=1 // pred_region
      %170 = vsyncadd [#allocation4], 0
      %s171 = sshll.u32 [#allocation7], 4
      %s172 = int_to_ptr.vmem [resolvable:$true] %s171
      %s173 = sshll.u32 %s5, 4
      %s174 = int_to_ptr.hbm [resolvable:$true] %s173
      %179 = dma.vmem_to_hbm [thread:$0]  %s172, 256, %s174, [#allocation4], 128, 128, 8
    $region33: #{tpu_custom_call.1} parent=1 // pred_fallthru
      _
    // Predicated region
    $region34: #{tpu_custom_call.1} parent=1 // pred_check
      _
    $region35: #{tpu_custom_call.1} parent=1 // pred_check_branch
      %181 = sbr.rel (0) target = $region37
    $region36: #{tpu_custom_call.1} parent=1 // pred_region
      %183 = vsyncadd [#allocation9], 0
      %s185 = sshll.u32 [#allocation8], 4
      %s186 = int_to_ptr.vmem [resolvable:$true] %s185
      %s187 = sshll.u32 %s6, 4
      %s188 = int_to_ptr.hbm [resolvable:$true] %s187
      %190 = dma.vmem_to_hbm [thread:$0]  %s186, 16, %s188, [#allocation9]
    $region37: #{tpu_custom_call.1} parent=1 // pred_fallthru
      _
    // Predicated region
    $region38: #{tpu_custom_call.1} parent=1 // pred_check
      _
    $region39: #{tpu_custom_call.1} parent=1 // pred_check_branch
      %192 = sbr.rel (0) target = $region41
    $region40: #{tpu_custom_call.1} parent=1 // pred_region
      %194 = dma.done [#allocation4], 256
    $region41: #{tpu_custom_call.1} parent=1 // pred_fallthru
      _
    // Predicated region
    $region42: #{tpu_custom_call.1} parent=1 // pred_check
      _
    $region43: #{tpu_custom_call.1} parent=1 // pred_check_branch
      %196 = sbr.rel (0) target = $region45
    $region44: #{tpu_custom_call.1} parent=1 // pred_region
      %198 = dma.done [#allocation9], 16
    $region45: #{tpu_custom_call.1} parent=1 // pred_fallthru
      _
    %199 = vsyncpa [#allocation3], 1
    %200 = vsyncpa [#allocation6], 1
    %201 = vsyncpa [#allocation4], 1
    %202 = vsyncpa [#allocation9], 1

</llo_original>
